<compile_context>
chip_gen: v6e
topology: v6e:2x2x1
jax: 0.10.0
libtpu: 0.0.40
codegen_flags: <defaults>
</compile_context>

<pallas_src>
import functools

import jax
import jax.numpy as jnp
from jax.experimental import pallas as pl
from jax.experimental.pallas import tpu as pltpu

LANE = 128    # TPU vreg lane width
SUBLANE = 8   # f32 sublane count


def _round_up(x, m):
    return (x + m - 1) // m * m


# ----------------------------------------------------------------------------
# Kernel: one GRU-Q step per grid iteration t.
# ----------------------------------------------------------------------------
def _rnn_qnet_kernel(obs_ref, h0_ref, w_ref, b_ref, q_ref, h_ref, *, cp):
    """obs_ref : (Bp, Din_p)        obs[t]            (streamed per step)
       h0_ref  : (Bp, Hp)           initial hidden    (VMEM resident)
       w_ref   : (R, 5*Hp+Ap) bf16  packed weights    (VMEM resident)
                 cols [0,Hp): fc1 | [Hp,5Hp): gates r|z|n_ih|n_hh | [5Hp,...): fc2
       b_ref   : (1, 5*Hp+Ap) f32   packed biases     (VMEM resident)
       q_ref   : (Bp, Ap)           q[t]              (streamed per step)
       h_ref   : (Bp, Hp)           hidden carry + final hidden (resident block)
       cp      : static K-dim of the fused gate matmul (Hp if lane-packed)."""
    Hp = h_ref.shape[-1]
    Ap = q_ref.shape[-1]
    Din_p = obs_ref.shape[-1]
    cdt = w_ref.dtype  # MXU operand dtype (bf16); accumulate + gate math in f32

    @pl.when(pl.program_id(0) == 0)
    def _():
        h_ref[...] = h0_ref[...]

    h = h_ref[...]

    # ---- fc1 + ReLU (weights pre-shifted so x lands at lanes [H, 2H)) ------
    x = jnp.dot(obs_ref[...].astype(cdt), w_ref[:Din_p, :Hp],
                preferred_element_type=jnp.float32)
    x = jnp.maximum(x + b_ref[:, :Hp], 0.0)

    # ---- GRUCell: ONE fused MXU pass over [h | x] ---------------------------
    if cp == Hp:              # lane-packed: h @ lanes [0,H), x @ lanes [H,2H)
        xh = x + h            # disjoint non-zero lanes -> a single VPU add
    else:                     # fallback when 2*H > Hp
        xh = jnp.concatenate([h, x], axis=-1)
    g = jnp.dot(xh.astype(cdt), w_ref[:cp, Hp:5 * Hp],
                preferred_element_type=jnp.float32) + b_ref[:, Hp:5 * Hp]

    r = jax.nn.sigmoid(g[:, 0 * Hp:1 * Hp])
    z = jax.nn.sigmoid(g[:, 1 * Hp:2 * Hp])
    n = jnp.tanh(g[:, 2 * Hp:3 * Hp] + r * g[:, 3 * Hp:4 * Hp])
    h_new = (1.0 - z) * n + z * h
    # Padded LANES of h_new stay exactly 0 (r=z=0.5, n=0, h=0) -> recurrent
    # reuse of the padded hidden layout is safe.  Padded batch ROWS are junk
    # after step 1 but are never read.

    # ---- fc2 ----------------------------------------------------------------
    q = jnp.dot(h_new.astype(cdt), w_ref[:Hp, 5 * Hp:5 * Hp + Ap],
                preferred_element_type=jnp.float32) + b_ref[:, 5 * Hp:5 * Hp + Ap]

    q_ref[...] = q
    h_ref[...] = h_new   # carry for step t+1; flushed to HBM after last step


# ----------------------------------------------------------------------------
# One-time parameter repacking (outside the hot path).
# ----------------------------------------------------------------------------
def pack_params(params, input_shape, rnn_hidden_dim, n_actions=4,
                compute_dtype=jnp.bfloat16):
    """Repack natural (in, out) params into a single padded weight slab
    [ fc1 | r | z | n_ih | n_hh | fc2 ] plus one bias slab.  Zero padding
    guarantees padded lanes contribute nothing."""
    H = rnn_hidden_dim
    Din_p = _round_up(input_shape, LANE)
    Hp = _round_up(H, LANE)
    Ap = _round_up(n_actions, LANE)
    lane_packed = (2 * H <= Hp)            # x and h share one Hp-wide block
    Cp = Hp if lane_packed else 2 * Hp     # K-dim of the fused gate matmul
    R = max(Din_p, Cp, Hp)                 # common row count of the slab
    x_col = H if lane_packed else 0        # fc1 output lane offset in its block
    x_row = H if lane_packed else Hp       # W_ih row offset in the gate block
    tot = 5 * Hp + Ap
    f32 = jnp.float32

    W = jnp.zeros((R, tot), f32)
    b = jnp.zeros((1, tot), f32)

    # fc1 block: slab cols [0, Hp); output written to lanes [x_col, x_col+H)
    W = W.at[:input_shape, x_col:x_col + H].set(params["w1"])
    b = b.at[:, x_col:x_col + H].set(params["b1"])

    # GRU block: slab cols [Hp, 5*Hp); sub-blocks r | z | n_ih | n_hh, Hp wide.
    # Rows [0, H): W_hh (h lanes);  rows [x_row, x_row+H): W_ih (x lanes).
    w_ih, w_hh = params["w_ih"], params["w_hh"]    # (H, 3H), gate order r,z,n
    b_ih, b_hh = params["b_ih"], params["b_hh"]    # (1, 3H)
    c0 = Hp
    for gate in range(2):                          # r, z: contributions summed
        cols = slice(c0 + gate * Hp, c0 + gate * Hp + H)
        W = W.at[0:H, cols].set(w_hh[:, gate * H:(gate + 1) * H])
        W = W.at[x_row:x_row + H, cols].set(w_ih[:, gate * H:(gate + 1) * H])
        b = b.at[:, cols].set(b_ih[:, gate * H:(gate + 1) * H]
                              + b_hh[:, gate * H:(gate + 1) * H])
    cols_nih = slice(c0 + 2 * Hp, c0 + 2 * Hp + H)  # n: kept separate (r-gated)
    cols_nhh = slice(c0 + 3 * Hp, c0 + 3 * Hp + H)
    W = W.at[x_row:x_row + H, cols_nih].set(w_ih[:, 2 * H:3 * H])
    W = W.at[0:H, cols_nhh].set(w_hh[:, 2 * H:3 * H])
    b = b.at[:, cols_nih].set(b_ih[:, 2 * H:3 * H])
    b = b.at[:, cols_nhh].set(b_hh[:, 2 * H:3 * H])

    # fc2 block: slab cols [5*Hp, 5*Hp + Ap)
    c2 = 5 * Hp
    W = W.at[0:H, c2:c2 + n_actions].set(params["w2"])
    b = b.at[:, c2:c2 + n_actions].set(params["b2"])

    return {"W": W.astype(compute_dtype),      # bf16: MXU-native, half the bytes
            "B": b,                            # biases stay f32 (added post-MXU)
            "dims": (input_shape, H, n_actions, Din_p, Hp, Ap, Cp, R)}


# ----------------------------------------------------------------------------
# Wrappers.
# ----------------------------------------------------------------------------
def rnn_qnet_rollout_padded(obs_seq_p, h0_p, kparams):
    """Padded-layout rollout: obs_seq_p (T, Bp, Din_p), h0_p (Bp, Hp) ->
    (q_seq_p (T, Bp, Ap), h_final_p (Bp, Hp)).  One pallas_call for all T."""
    input_shape, H, n_actions, Din_p, Hp, Ap, Cp, R = kparams["dims"]
    T, Bp, _ = obs_seq_p.shape
    tot = 5 * Hp + Ap
    W, b = kparams["W"], kparams["B"]

    flops = 2 * T * Bp * (Din_p * Hp + Cp * 4 * Hp + Hp * Ap)
    transcendentals = 3 * T * Bp * Hp
    bytes_accessed = (W.size * W.dtype.itemsize + b.size * b.dtype.itemsize
                      + 4 * (obs_seq_p.size + h0_p.size + T * Bp * Ap + Bp * Hp))

    return pl.pallas_call(
        functools.partial(_rnn_qnet_kernel, cp=Cp),
        grid=(T,),
        in_specs=[
            pl.BlockSpec((None, Bp, Din_p), lambda t: (t, 0, 0)),   # obs[t]
            pl.BlockSpec((Bp, Hp), lambda t: (0, 0)),               # h0 (resident)
            pl.BlockSpec((R, tot), lambda t: (0, 0)),               # W  (resident)
            pl.BlockSpec((1, tot), lambda t: (0, 0)),               # b  (resident)
        ],
        out_specs=(
            pl.BlockSpec((None, Bp, Ap), lambda t: (t, 0, 0)),      # q[t]
            pl.BlockSpec((Bp, Hp), lambda t: (0, 0)),               # h carry/final
        ),
        out_shape=(
            jax.ShapeDtypeStruct((T, Bp, Ap), jnp.float32),
            jax.ShapeDtypeStruct((Bp, Hp), jnp.float32),
        ),
        compiler_params=pltpu.CompilerParams(dimension_semantics=("arbitrary",)),
        cost_estimate=pl.CostEstimate(flops=flops,
                                      transcendentals=transcendentals,
                                      bytes_accessed=bytes_accessed),
    )(obs_seq_p, h0_p, W, b)


def rnn_qnet_rollout(obs_seq, hidden_state, kparams):
    """obs_seq (T, B, input_shape), hidden_state (B, H) -> (q_seq (T,B,4), h_T)."""
    input_shape, H, n_actions, Din_p, Hp, Ap, Cp, R = kparams["dims"]
    T, B = obs_seq.shape[0], obs_seq.shape[1]
    Bp = _round_up(max(B, 1), SUBLANE)
    obs_p = jnp.zeros((T, Bp, Din_p), jnp.float32).at[:, :B, :input_shape].set(
        obs_seq.astype(jnp.float32))
    h_p = jnp.zeros((Bp, Hp), jnp.float32).at[:B, :H].set(
        hidden_state.reshape(-1, H).astype(jnp.float32))
    q_seq_p, h_out_p = rnn_qnet_rollout_padded(obs_p, h_p, kparams)
    return q_seq_p[:, :B, :n_actions], h_out_p[:B, :H]


def rnn_qnet_forward(obs, hidden_state, kparams):
    """Single GRU step -- exact RNNQNet.forward semantics: returns (q, h)."""
    q_seq, h = rnn_qnet_rollout(obs[None], hidden_state, kparams)
    return q_seq[0], h


# ----------------------------------------------------------------------------
# Init + pure-JAX reference (PyTorch GRUCell semantics).
# ----------------------------------------------------------------------------
def init_params(key, input_shape, rnn_hidden_dim, n_actions=4):
    ks = jax.random.split(key, 8)

    def u(k, shape, fan_in):
        bound = 1.0 / jnp.sqrt(fan_in)
        return jax.random.uniform(k, shape, jnp.float32, -bound, bound)

    H = rnn_hidden_dim
    return {"w1": u(ks[0], (input_shape, H), input_shape),
            "b1": u(ks[1], (1, H), input_shape),
            "w_ih": u(ks[2], (H, 3 * H), H),   # gate order r, z, n
            "b_ih": u(ks[3], (1, 3 * H), H),
            "w_hh": u(ks[4], (H, 3 * H), H),
            "b_hh": u(ks[5], (1, 3 * H), H),
            "w2": u(ks[6], (H, n_actions), H),
            "b2": u(ks[7], (1, n_actions), H)}


def _reference_forward(obs, hidden_state, params):
    H = params["w_hh"].shape[0]
    x = jax.nn.relu(obs @ params["w1"] + params["b1"])
    h = hidden_state.reshape(-1, H)
    gi = x @ params["w_ih"] + params["b_ih"]
    gh = h @ params["w_hh"] + params["b_hh"]
    i_r, i_z, i_n = gi[:, :H], gi[:, H:2 * H], gi[:, 2 * H:]
    h_r, h_z, h_n = gh[:, :H], gh[:, H:2 * H], gh[:, 2 * H:]
    r = jax.nn.sigmoid(i_r + h_r)
    z = jax.nn.sigmoid(i_z + h_z)
    n = jnp.tanh(i_n + r * h_n)
    h_new = (1.0 - z) * n + z * h
    q = h_new @ params["w2"] + params["b2"]
    return q, h_new


def _reference_rollout(obs_seq, hidden_state, params):
    h = hidden_state
    qs = []
    for t in range(obs_seq.shape[0]):
        q, h = _reference_forward(obs_seq[t], h, params)
        qs.append(q)
    return jnp.stack(qs), h


if __name__ == "__main__":
    B = 2             # batch
    INPUT_SHAPE = 16  # obs feature dim
    H = 32            # rnn_hidden_dim
    N_ACTIONS = 4
    T = 8             # rollout length for the fused grid=(T,) path

    key = jax.random.PRNGKey(0)
    k_obs, k_seq, k_hid, k_par = jax.random.split(key, 4)

    obs = jax.random.normal(k_obs, (B, INPUT_SHAPE), jnp.float32)
    obs_seq = jax.random.normal(k_seq, (T, B, INPUT_SHAPE), jnp.float32)
    hidden_state = jax.random.normal(k_hid, (B, H), jnp.float32)
    params = init_params(k_par, INPUT_SHAPE, H, N_ACTIONS)
    kparams = pack_params(params, INPUT_SHAPE, H, N_ACTIONS)   # one-time repack

    # --- single step: exact module forward semantics (grid=(1,)) ------------
    q, h = rnn_qnet_forward(obs, hidden_state, kparams)
    jax.block_until_ready((q, h))
    q_ref, h_ref = _reference_forward(obs, hidden_state, params)
    assert q.shape == (B, N_ACTIONS) and h.shape == (B, H)
    # bf16 MXU operands -> tolerances loosened vs. the old 1e-5 f32 check.
    assert jnp.allclose(q, q_ref, atol=3e-2, rtol=3e-2)
    assert jnp.allclose(h, h_ref, atol=3e-2, rtol=3e-2)

    # --- T-step rollout: one pallas_call, weights VMEM-resident -------------
    q_seq, h_T = rnn_qnet_rollout(obs_seq, hidden_state, kparams)
    jax.block_until_ready((q_seq, h_T))
    q_seq_ref, h_T_ref = _reference_rollout(obs_seq, hidden_state, params)
    assert q_seq.shape == (T, B, N_ACTIONS) and h_T.shape == (B, H)
    assert jnp.allclose(q_seq, q_seq_ref, atol=5e-2, rtol=5e-2)
    assert jnp.allclose(h_T, h_T_ref, atol=5e-2, rtol=5e-2)

    print("KERNEL_OK")
</pallas_src>

<mosaic_0001>
module attributes {stable_mosaic.version = 11 : i64} {
  func.func @_rnn_qnet_kernel(%arg0: i32, %arg1: memref<1x8x128xf32, #tpu.memory_space<vmem>>, %arg2: memref<8x128xf32, #tpu.memory_space<vmem>>, %arg3: memref<128x768xbf16, #tpu.memory_space<vmem>>, %arg4: memref<1x768xf32, #tpu.memory_space<vmem>>, %arg5: memref<1x8x128xf32, #tpu.memory_space<vmem>>, %arg6: memref<8x128xf32, #tpu.memory_space<vmem>>) attributes {dimension_semantics = [#tpu.dimension_semantics<arbitrary>], iteration_bounds = array<i64: 1>, scalar_prefetch = 0 : i64, scratch_operands = 0 : i64, tpu.core_type = #tpu.core_type<tc>, window_params = [{transform_indices = @transform_0, window_bounds = array<i64: 1, 8, 128>}, {pipeline_mode = #tpu.pipeline_mode<synchronous>, transform_indices = @transform_1, window_bounds = array<i64: 8, 128>}, {pipeline_mode = #tpu.pipeline_mode<synchronous>, transform_indices = @transform_2, window_bounds = array<i64: 128, 768>}, {pipeline_mode = #tpu.pipeline_mode<synchronous>, transform_indices = @transform_3, window_bounds = array<i64: 1, 768>}, {transform_indices = @transform_4, window_bounds = array<i64: 1, 8, 128>}, {pipeline_mode = #tpu.pipeline_mode<synchronous>, transform_indices = @transform_5, window_bounds = array<i64: 8, 128>}]} {
    %c0_i32 = arith.constant 0 : i32
    %0 = arith.cmpi eq, %arg0, %c0_i32 : i32
    %1 = arith.extui %0 : i1 to i32
    %c0_i32_0 = arith.constant 0 : i32
    %2 = arith.cmpi ne, %1, %c0_i32_0 : i32
    scf.if %2 {
      %c0_26 = arith.constant 0 : index
      %c0_27 = arith.constant 0 : index
      %53 = vector.load %arg2[%c0_26, %c0_27] : memref<8x128xf32, #tpu.memory_space<vmem>>, vector<8x128xf32>
      %c0_28 = arith.constant 0 : index
      %c0_29 = arith.constant 0 : index
      %54 = vector.load %arg6[%c0_28, %c0_29] : memref<8x128xf32, #tpu.memory_space<vmem>>, vector<8x128xf32>
      tpu.vector_store %arg6[%c0_28, %c0_29], %53 {strides = array<i32>} : memref<8x128xf32, #tpu.memory_space<vmem>>, vector<8x128xf32>,
    } else {
    }
    %c0 = arith.constant 0 : index
    %c0_1 = arith.constant 0 : index
    %3 = vector.load %arg6[%c0, %c0_1] : memref<8x128xf32, #tpu.memory_space<vmem>>, vector<8x128xf32>
    %c0_2 = arith.constant 0 : index
    %c0_3 = arith.constant 0 : index
    %c0_4 = arith.constant 0 : index
    %4 = vector.load %arg1[%c0_2, %c0_3, %c0_4] : memref<1x8x128xf32, #tpu.memory_space<vmem>>, vector<1x8x128xf32>
    %5 = vector.shape_cast %4 : vector<1x8x128xf32> to vector<8x128xf32>
    %6 = arith.truncf %5 : vector<8x128xf32> to vector<8x128xbf16>
    %c0_5 = arith.constant 0 : index
    %c0_6 = arith.constant 0 : index
    %7 = vector.load %arg3[%c0_5, %c0_6] : memref<128x768xbf16, #tpu.memory_space<vmem>>, vector<128x128xbf16>
    %cst = arith.constant dense<0.000000e+00> : vector<8x128xf32>
    %8 = tpu.matmul %6, %7, %cst {dimension_numbers = #tpu.dot_dimension_numbers<[1], [0], [0], [1], [0, 0, 1, 1], [], []>} : vector<8x128xbf16>, vector<128x128xbf16>, vector<8x128xf32> -> vector<8x128xf32>
    %c0_7 = arith.constant 0 : index
    %c0_8 = arith.constant 0 : index
    %9 = vector.load %arg4[%c0_7, %c0_8] : memref<1x768xf32, #tpu.memory_space<vmem>>, vector<1x128xf32>
    %10 = vector.broadcast %9 : vector<1x128xf32> to vector<8x128xf32>
    %11 = arith.addf %8, %10 : vector<8x128xf32>
    %cst_9 = arith.constant 0.000000e+00 : f32
    %12 = vector.broadcast %cst_9 : f32 to vector<8x128xf32>
    %13 = arith.maximumf %11, %12 : vector<8x128xf32>
    %14 = arith.addf %13, %3 : vector<8x128xf32>
    %15 = arith.truncf %14 : vector<8x128xf32> to vector<8x128xbf16>
    %c0_10 = arith.constant 0 : index
    %c128 = arith.constant 128 : index
    %16 = vector.load %arg3[%c0_10, %c128] : memref<128x768xbf16, #tpu.memory_space<vmem>>, vector<128x512xbf16>
    %cst_11 = arith.constant dense<0.000000e+00> : vector<8x512xf32>
    %17 = tpu.matmul %15, %16, %cst_11 {dimension_numbers = #tpu.dot_dimension_numbers<[1], [0], [0], [1], [0, 0, 1, 1], [], []>} : vector<8x128xbf16>, vector<128x512xbf16>, vector<8x512xf32> -> vector<8x512xf32>
    %c0_12 = arith.constant 0 : index
    %c128_13 = arith.constant 128 : index
    %18 = vector.load %arg4[%c0_12, %c128_13] : memref<1x768xf32, #tpu.memory_space<vmem>>, vector<1x512xf32>
    %19 = vector.broadcast %18 : vector<1x512xf32> to vector<8x512xf32>
    %20 = arith.addf %17, %19 : vector<8x512xf32>
    %21 = vector.extract_strided_slice %20 {offsets = [0, 0], sizes = [8, 128], strides = [1, 1]} : vector<8x512xf32> to vector<8x128xf32>
    %22 = arith.negf %21 : vector<8x128xf32>
    %23 = math.exp %22 : vector<8x128xf32>
    %cst_14 = arith.constant 1.000000e+00 : f32
    %24 = vector.broadcast %cst_14 : f32 to vector<8x128xf32>
    %25 = arith.addf %24, %23 : vector<8x128xf32>
    %26 = arith.divf %24, %25 : vector<8x128xf32>
    %27 = vector.extract_strided_slice %20 {offsets = [0, 128], sizes = [8, 128], strides = [1, 1]} : vector<8x512xf32> to vector<8x128xf32>
    %28 = arith.negf %27 : vector<8x128xf32>
    %29 = math.exp %28 : vector<8x128xf32>
    %cst_15 = arith.constant 1.000000e+00 : f32
    %30 = vector.broadcast %cst_15 : f32 to vector<8x128xf32>
    %31 = arith.addf %30, %29 : vector<8x128xf32>
    %32 = arith.divf %30, %31 : vector<8x128xf32>
    %33 = vector.extract_strided_slice %20 {offsets = [0, 256], sizes = [8, 128], strides = [1, 1]} : vector<8x512xf32> to vector<8x128xf32>
    %34 = vector.extract_strided_slice %20 {offsets = [0, 384], sizes = [8, 128], strides = [1, 1]} : vector<8x512xf32> to vector<8x128xf32>
    %35 = arith.mulf %26, %34 : vector<8x128xf32>
    %36 = arith.addf %33, %35 : vector<8x128xf32>
    %37 = math.tanh %36 : vector<8x128xf32>
    %cst_16 = arith.constant 1.000000e+00 : f32
    %38 = vector.broadcast %cst_16 : f32 to vector<8x128xf32>
    %39 = arith.subf %38, %32 : vector<8x128xf32>
    %40 = arith.mulf %39, %37 : vector<8x128xf32>
    %41 = arith.mulf %32, %3 : vector<8x128xf32>
    %42 = arith.addf %40, %41 : vector<8x128xf32>
    %43 = arith.truncf %42 : vector<8x128xf32> to vector<8x128xbf16>
    %c0_17 = arith.constant 0 : index
    %c640 = arith.constant 640 : index
    %44 = vector.load %arg3[%c0_17, %c640] : memref<128x768xbf16, #tpu.memory_space<vmem>>, vector<128x128xbf16>
    %cst_18 = arith.constant dense<0.000000e+00> : vector<8x128xf32>
    %45 = tpu.matmul %43, %44, %cst_18 {dimension_numbers = #tpu.dot_dimension_numbers<[1], [0], [0], [1], [0, 0, 1, 1], [], []>} : vector<8x128xbf16>, vector<128x128xbf16>, vector<8x128xf32> -> vector<8x128xf32>
    %c0_19 = arith.constant 0 : index
    %c640_20 = arith.constant 640 : index
    %46 = vector.load %arg4[%c0_19, %c640_20] : memref<1x768xf32, #tpu.memory_space<vmem>>, vector<1x128xf32>
    %47 = vector.broadcast %46 : vector<1x128xf32> to vector<8x128xf32>
    %48 = arith.addf %45, %47 : vector<8x128xf32>
    %c0_21 = arith.constant 0 : index
    %c0_22 = arith.constant 0 : index
    %c0_23 = arith.constant 0 : index
    %49 = vector.load %arg5[%c0_21, %c0_22, %c0_23] : memref<1x8x128xf32, #tpu.memory_space<vmem>>, vector<1x8x128xf32>
    %50 = vector.shape_cast %49 : vector<1x8x128xf32> to vector<8x128xf32>
    %51 = vector.shape_cast %48 : vector<8x128xf32> to vector<1x8x128xf32>
    tpu.vector_store %arg5[%c0_21, %c0_22, %c0_23], %51 {strides = array<i32>} : memref<1x8x128xf32, #tpu.memory_space<vmem>>, vector<1x8x128xf32>,
    %c0_24 = arith.constant 0 : index
    %c0_25 = arith.constant 0 : index
    %52 = vector.load %arg6[%c0_24, %c0_25] : memref<8x128xf32, #tpu.memory_space<vmem>>, vector<8x128xf32>
    tpu.vector_store %arg6[%c0_24, %c0_25], %42 {strides = array<i32>} : memref<8x128xf32, #tpu.memory_space<vmem>>, vector<8x128xf32>,
    return
  }
  func.func @transform_0(%arg0: i32) -> (i32, i32, i32) {
    %c0_i32 = arith.constant 0 : i32
    %c0_i32_0 = arith.constant 0 : i32
    %c0_i32_1 = arith.constant 0 : i32
    return %arg0, %c0_i32, %c0_i32_0 : i32, i32, i32
  }
  func.func @transform_1(%arg0: i32) -> (i32, i32) {
    %c0_i32 = arith.constant 0 : i32
    %c0_i32_0 = arith.constant 0 : i32
    %c0_i32_1 = arith.constant 0 : i32
    return %c0_i32, %c0_i32_0 : i32, i32
  }
  func.func @transform_2(%arg0: i32) -> (i32, i32) {
    %c0_i32 = arith.constant 0 : i32
    %c0_i32_0 = arith.constant 0 : i32
    %c0_i32_1 = arith.constant 0 : i32
    return %c0_i32, %c0_i32_0 : i32, i32
  }
  func.func @transform_3(%arg0: i32) -> (i32, i32) {
    %c0_i32 = arith.constant 0 : i32
    %c0_i32_0 = arith.constant 0 : i32
    %c0_i32_1 = arith.constant 0 : i32
    return %c0_i32, %c0_i32_0 : i32, i32
  }
  func.func @transform_4(%arg0: i32) -> (i32, i32, i32) {
    %c0_i32 = arith.constant 0 : i32
    %c0_i32_0 = arith.constant 0 : i32
    %c0_i32_1 = arith.constant 0 : i32
    return %arg0, %c0_i32, %c0_i32_0 : i32, i32, i32
  }
  func.func @transform_5(%arg0: i32) -> (i32, i32) {
    %c0_i32 = arith.constant 0 : i32
    %c0_i32_0 = arith.constant 0 : i32
    %c0_i32_1 = arith.constant 0 : i32
    return %c0_i32, %c0_i32_0 : i32, i32
  }
}

</mosaic_0001>

<llo_original>
// kernel: tpu_custom_call.1
$region0: #{tpu_custom_call.1}
  #allocation0 [shape = 'u32[]', space=smem, size = 0x4, offset = 0x4, fixed_abs, tag = 'smem constant byte address 0x4 - core index']
  #allocation1 [shape = 'u32[144,128]{1,0:T(1,128)}', space=vmem, size = 0x12000, scoped, tag = 'internal scratch']
  %s0 = inlined_call_operand.hbm [shape: f32[1,8,128], index: 0, kind: input, shape index: {}]
  %s1 = inlined_call_operand.hbm [shape: f32[8,128], index: 1, kind: input, shape index: {}]
  %s2 = inlined_call_operand.hbm [shape: bf16[128,768], index: 2, kind: input, shape index: {}]
  %s3 = inlined_call_operand.hbm [shape: f32[1,768], index: 3, kind: input, shape index: {}]
  %s4 = inlined_call_operand.hbm [shape: f32[1,8,128], index: 4, kind: output, shape index: {0}]
  %s5 = inlined_call_operand.hbm [shape: f32[8,128], index: 5, kind: output, shape index: {1}]
  %6 = xla_tuple %s4, %s5
  %s7 = sld [smem:[#allocation0]]
  $region54: #{tpu_custom_call.1} parent=0
    _
  %s9 = ssub.s32 1, %s7
  %s10 = scalar_select 0, %s9, %s7
  $region1: #{tpu_custom_call.1} parent=0
    #allocation2 [shape = 'u8[4096]{0}', space=vmem, size = 0x1000, scoped, tag = 'input window, operand 0, single buffered']
    #allocation3 [shape = 's32[1]{0}', space=sflag, size = 0x4, scoped, tag = 'scoped memory for tpu_custom_call.1']
    #allocation4 [shape = 's32[1]{0}', space=sflag, size = 0x4, scoped, tag = 'scoped memory for tpu_custom_call.1']
    #allocation5 [shape = 'u8[4096]{0}', space=vmem, size = 0x1000, scoped, tag = 'input window, operand 1, single buffered']
    #allocation6 [shape = 's32[1]{0}', space=sflag, size = 0x4, scoped, tag = 'scoped memory for tpu_custom_call.1']
    #allocation7 [shape = 'u8[196608]{0}', space=vmem, size = 0x30000, scoped, tag = 'input window, operand 2, single buffered']
    #allocation8 [shape = 'u8[3072]{0}', space=vmem, size = 0xc00, scoped, tag = 'input window, operand 3, single buffered']
    #allocation9 [shape = 's32[1]{0}', space=sflag, size = 0x4, scoped, tag = 'scoped memory for tpu_custom_call.1']
    #allocation10 [shape = 'u8[4096]{0}', space=vmem, size = 0x1000, scoped, tag = 'output window, operand 0, single buffered']
    #allocation11 [shape = 'u8[4096]{0}', space=vmem, size = 0x1000, scoped, tag = 'output window, operand 1, single buffered']
    #allocation12 [shape = 's32[1]{0}', space=sflag, size = 0x4, scoped, tag = 'scoped memory for tpu_custom_call.1']
    %11 = vsyncpa [#allocation3], 0
    %12 = vsyncpa [#allocation6], 0
    %13 = vsyncpa [#allocation9], 0
    %14 = vsyncpa [#allocation4], 0
    %15 = vsyncpa [#allocation12], 0
    // Predicated region
    $region2: #{tpu_custom_call.1} parent=1 // pred_check
      _
    $region3: #{tpu_custom_call.1} parent=1 // pred_check_branch
      %17 = sbr.rel (0) target = $region5
    $region4: #{tpu_custom_call.1} parent=1 // pred_region
      %s19 = ssub.s32 128, 128
      %20 = vsyncadd [#allocation3], %s19
      %s22 = sshll.u32 [#allocation2], 4
      %s23 = int_to_ptr.vmem [resolvable:$true] %s22
      %25 = dma.hbm_to_vmem [thread:$0]  %s0, 128, %s23, [#allocation3]
    $region5: #{tpu_custom_call.1} parent=1 // pred_fallthru
      _
    // Predicated region
    $region6: #{tpu_custom_call.1} parent=1 // pred_check
      _
    $region7: #{tpu_custom_call.1} parent=1 // pred_check_branch
      %27 = sbr.rel (0) target = $region9
    $region8: #{tpu_custom_call.1} parent=1 // pred_region
      %s29 = ssub.s32 128, 128
      %30 = vsyncadd [#allocation6], %s29
      %s32 = sshll.u32 [#allocation5], 4
      %s33 = int_to_ptr.vmem [resolvable:$true] %s32
      %35 = dma.hbm_to_vmem [thread:$0]  %s1, 128, %s33, [#allocation6]
    $region9: #{tpu_custom_call.1} parent=1 // pred_fallthru
      _
    // Predicated region
    $region10: #{tpu_custom_call.1} parent=1 // pred_check
      _
    $region11: #{tpu_custom_call.1} parent=1 // pred_check_branch
      %37 = sbr.rel (0) target = $region13
    $region12: #{tpu_custom_call.1} parent=1 // pred_region
      %s39 = ssub.s32 6144, 6144
      %40 = vsyncadd [#allocation6], %s39
      %s41 = sshll.u32 [#allocation7], 4
      %s42 = int_to_ptr.vmem [resolvable:$true] %s41
      %47 = dma.hbm_to_vmem [thread:$0]  %s2, 6144, %s42, [#allocation6], 384, 384, 24
    $region13: #{tpu_custom_call.1} parent=1 // pred_fallthru
      _
    // Predicated region
    $region14: #{tpu_custom_call.1} parent=1 // pred_check
      _
    $region15: #{tpu_custom_call.1} parent=1 // pred_check_branch
      %49 = sbr.rel (0) target = $region17
    $region16: #{tpu_custom_call.1} parent=1 // pred_region
      %s51 = ssub.s32 96, 96
      %52 = vsyncadd [#allocation9], %s51
      %s54 = sshll.u32 [#allocation8], 4
      %s55 = int_to_ptr.vmem [resolvable:$true] %s54
      %57 = dma.hbm_to_vmem [thread:$0]  %s3, 96, %s55, [#allocation9]
    $region17: #{tpu_custom_call.1} parent=1 // pred_fallthru
      _
    // Predicated region
    $region18: #{tpu_custom_call.1} parent=1 // pred_check
      _
    $region19: #{tpu_custom_call.1} parent=1 // pred_check_branch
      %59 = sbr.rel (0) target = $region21
    $region20: #{tpu_custom_call.1} parent=1 // pred_region
      %60 = dma.done [#allocation3], 128
    $region21: #{tpu_custom_call.1} parent=1 // pred_fallthru
      _
    // Predicated region
    $region22: #{tpu_custom_call.1} parent=1 // pred_check
      _
    $region23: #{tpu_custom_call.1} parent=1 // pred_check_branch
      %62 = sbr.rel (0) target = $region25
    $region24: #{tpu_custom_call.1} parent=1 // pred_region
      %63 = dma.done [#allocation6], 128
    $region25: #{tpu_custom_call.1} parent=1 // pred_fallthru
      _
    // Predicated region
    $region26: #{tpu_custom_call.1} parent=1 // pred_check
      _
    $region27: #{tpu_custom_call.1} parent=1 // pred_check_branch
      %65 = sbr.rel (0) target = $region29
    $region28: #{tpu_custom_call.1} parent=1 // pred_region
      %66 = dma.done [#allocation6], 6144
    $region29: #{tpu_custom_call.1} parent=1 // pred_fallthru
      _
    // Predicated region
    $region30: #{tpu_custom_call.1} parent=1 // pred_check
      _
    $region31: #{tpu_custom_call.1} parent=1 // pred_check_branch
      %68 = sbr.rel (0) target = $region33
    $region32: #{tpu_custom_call.1} parent=1 // pred_region
      %69 = dma.done [#allocation9], 96
    $region33: #{tpu_custom_call.1} parent=1 // pred_fallthru
      _
    %p71 = scmp.eq.s32.totalorder 0, 0
    // Predicated region
    $region34: #{tpu_custom_call.1} parent=1 // pred_check
      %p72 = pneg %p71
    $region35: #{tpu_custom_call.1} parent=1 // pred_check_branch
      %74 = sbr.rel (%p72) target = $region37
    $region36: #{tpu_custom_call.1} parent=1 // pred_region
      %v75 = vld [vmem:[#allocation5] sm:$0xff]
      %76 = vst [vmem:[#allocation11] sm:$0xff] %v75
    $region37: #{tpu_custom_call.1} parent=1 // pred_fallthru
      _
    %v77 = vld [vmem:[#allocation11] sm:$0xff]
    %v78 = vld [vmem:[#allocation2] sm:$0xff]
    %v79 = vpack.c.bf16 %v78, %v78
    %v80 = vld [vmem:[#allocation7] sm:$0xf]
    %v81 = vld [vmem:[#allocation7 + $0x18] sm:$0xf]
    %v82 = vld [vmem:[#allocation7 + $0x30] sm:$0xf]
    %v83 = vld [vmem:[#allocation7 + $0x48] sm:$0xf]
    %v84 = vld [vmem:[#allocation7 + $0x60] sm:$0xf]
    %v85 = vld [vmem:[#allocation7 + $0x78] sm:$0xf]
    %v86 = vld [vmem:[#allocation7 + $0x90] sm:$0xf]
    %v87 = vld [vmem:[#allocation7 + $0xa8] sm:$0xf]
    %v88 = vld [vmem:[#allocation7 + $0xc0] sm:$0xf]
    %v89 = vld [vmem:[#allocation7 + $0xd8] sm:$0xf]
    %v90 = vld [vmem:[#allocation7 + $0xf0] sm:$0xf]
    %v91 = vld [vmem:[#allocation7 + $0x108] sm:$0xf]
    %v92 = vld [vmem:[#allocation7 + $0x120] sm:$0xf]
    %v93 = vld [vmem:[#allocation7 + $0x138] sm:$0xf]
    %v94 = vld [vmem:[#allocation7 + $0x150] sm:$0xf]
    %v95 = vld [vmem:[#allocation7 + $0x168] sm:$0xf]
    %v96 = vld [vmem:[#allocation8] sm:$0x1]
    %v98 = vlaneseq
    %v99 = vshrl.u32 %v98, 7
    %v100 = vsub.s32 0, %v99
    %v101 = vrot.slane %v96, %v100
    %v119 = vunpack.c.l.b16 %v80
    %v120 = vunpack.c.l.b16 %v81
    %v121 = vunpack.c.l.b16 %v82
    %v122 = vunpack.c.l.b16 %v83
    %v123 = vunpack.c.l.b16 %v84
    %v124 = vunpack.c.l.b16 %v85
    %v125 = vunpack.c.l.b16 %v86
    %v126 = vunpack.c.l.b16 %v87
    %v127 = vunpack.c.l.b16 %v88
    %v128 = vunpack.c.l.b16 %v89
    %v129 = vunpack.c.l.b16 %v90
    %v130 = vunpack.c.l.b16 %v91
    %v131 = vunpack.c.l.b16 %v92
    %v132 = vunpack.c.l.b16 %v93
    %v133 = vunpack.c.l.b16 %v94
    %v134 = vunpack.c.l.b16 %v95
    %v135 = vpack.c.b16 %v120, %v119
    %v136 = vpack.c.b16 %v122, %v121
    %v137 = vpack.c.b16 %v124, %v123
    %v138 = vpack.c.b16 %v126, %v125
    %v139 = vpack.c.b16 %v128, %v127
    %v140 = vpack.c.b16 %v130, %v129
    %v141 = vpack.c.b16 %v132, %v131
    %v142 = vpack.c.b16 %v134, %v133
    %151 = vmatprep.subr.bf16.mxu0 0
    %152 = vmatpush1.bf16.msra.mxu0 %v142
    %153 = vmatprep.subr.bf16.mxu0 0
    %154 = vmatpush1.bf16.msra.mxu0 %v141
    %155 = vmatprep.subr.bf16.mxu0 0
    %156 = vmatpush1.bf16.msra.mxu0 %v140
    %157 = vmatprep.subr.bf16.mxu0 0
    %158 = vmatpush1.bf16.msra.mxu0 %v139
    %159 = vmatprep.subr.bf16.mxu0 0
    %160 = vmatpush1.bf16.msra.mxu0 %v138
    %161 = vmatprep.subr.bf16.mxu0 0
    %162 = vmatpush1.bf16.msra.mxu0 %v137
    %163 = vmatprep.subr.bf16.mxu0 0
    %164 = vmatpush1.bf16.msra.mxu0 %v136
    %165 = vmatprep.subr.bf16.mxu0 0
    %166 = vmatpush1.bf16.msra.mxu0 %v135
    %167 = vmatprep.subr.bf16.mxu0 0
    %168 = vmatpush2.bf16.msra.mxu0 0
    %169 = vmatprep.subr.bf16.mxu0 0
    %170 = vmatpush2.bf16.msra.mxu0 0
    %171 = vmatprep.subr.bf16.mxu0 0
    %172 = vmatpush2.bf16.msra.mxu0 0
    %173 = vmatprep.subr.bf16.mxu0 0
    %174 = vmatpush2.bf16.msra.mxu0 0
    %175 = vmatprep.subr.bf16.mxu0 0
    %176 = vmatpush2.bf16.msra.mxu0 0
    %177 = vmatprep.subr.bf16.mxu0 0
    %178 = vmatpush2.bf16.msra.mxu0 0
    %179 = vmatprep.subr.bf16.mxu0 0
    %180 = vmatpush2.bf16.msra.mxu0 0
    %181 = vmatprep.subr.bf16.mxu0 0
    %182 = vmatpush2.bf16.msra.mxu0 0
    %183 = vmatprep.mubr.bf16.mxu0 0
    %184 = vmatmul.mubr.bf16.gmra.mxu0 %v79
    %v185 = vpop.f32.mrf.mxu0
    %v186 = vadd.f32 %v101, %v185
    %v187 = vpop.f32.mrf.mxu0
    %v188 = vpop.f32.mrf.mxu0
    %v189 = vpop.f32.mrf.mxu0
    %190 = vdwg.mxu0
    %v191 = vmax.f32 %v186, 0.0
    %v192 = vadd.f32 %v191, %v77
    %v193 = vpack.c.bf16 %v192, %v192
    %v194 = vld [vmem:[#allocation7 + $0x4] sm:$0xff]
    %v195 = vld [vmem:[#allocation7 + $0xc] sm:$0xff]
    %v196 = vld [vmem:[#allocation7 + $0x1c] sm:$0xff]
    %v197 = vld [vmem:[#allocation7 + $0x24] sm:$0xff]
    %v198 = vld [vmem:[#allocation7 + $0x34] sm:$0xff]
    %v199 = vld [vmem:[#allocation7 + $0x3c] sm:$0xff]
    %v200 = vld [vmem:[#allocation7 + $0x4c] sm:$0xff]
    %v201 = vld [vmem:[#allocation7 + $0x54] sm:$0xff]
    %v202 = vld [vmem:[#allocation7 + $0x64] sm:$0xff]
    %v203 = vld [vmem:[#allocation7 + $0x6c] sm:$0xff]
    %v204 = vld [vmem:[#allocation7 + $0x7c] sm:$0xff]
    %v205 = vld [vmem:[#allocation7 + $0x84] sm:$0xff]
    %v206 = vld [vmem:[#allocation7 + $0x94] sm:$0xff]
    %v207 = vld [vmem:[#allocation7 + $0x9c] sm:$0xff]
    %v208 = vld [vmem:[#allocation7 + $0xac] sm:$0xff]
    %v209 = vld [vmem:[#allocation7 + $0xb4] sm:$0xff]
    %v210 = vld [vmem:[#allocation7 + $0xc4] sm:$0xff]
    %v211 = vld [vmem:[#allocation7 + $0xcc] sm:$0xff]
    %v212 = vld [vmem:[#allocation7 + $0xdc] sm:$0xff]
    %v213 = vld [vmem:[#allocation7 + $0xe4] sm:$0xff]
    %v214 = vld [vmem:[#allocation7 + $0xf4] sm:$0xff]
    %v215 = vld [vmem:[#allocation7 + $0xfc] sm:$0xff]
    %v216 = vld [vmem:[#allocation7 + $0x10c] sm:$0xff]
    %v217 = vld [vmem:[#allocation7 + $0x114] sm:$0xff]
    %v218 = vld [vmem:[#allocation7 + $0x124] sm:$0xff]
    %v219 = vld [vmem:[#allocation7 + $0x12c] sm:$0xff]
    %v220 = vld [vmem:[#allocation7 + $0x13c] sm:$0xff]
    %v221 = vld [vmem:[#allocation7 + $0x144] sm:$0xff]
    %v222 = vld [vmem:[#allocation7 + $0x154] sm:$0xff]
    %v223 = vld [vmem:[#allocation7 + $0x15c] sm:$0xff]
    %v224 = vld [vmem:[#allocation7 + $0x16c] sm:$0xff]
    %v225 = vld [vmem:[#allocation7 + $0x174] sm:$0xff]
    %v226 = vld [vmem:[#allocation8 + $0x1] sm:$0xf]
    %v228 = vlaneseq
    %v229 = vshrl.u32 %v228, 7
    %v230 = vsub.s32 0, %v229
    %v231 = vrot.slane %v226, %v230
    %v232 = vlaneseq
    %v233 = vshrl.u32 %v232, 7
    %v234 = vsub.s32 1, %v233
    %v235 = vrot.slane %v226, %v234
    %v236 = vlaneseq
    %v237 = vshrl.u32 %v236, 7
    %v238 = vsub.s32 2, %v237
    %v239 = vrot.slane %v226, %v238
    %v240 = vlaneseq
    %v241 = vshrl.u32 %v240, 7
    %v242 = vsub.s32 3, %v241
    %v243 = vrot.slane %v226, %v242
    %v280 = vunpack.c.l.b16 %v194
    %v281 = vunpack.c.h.b16 %v194
    %v282 = vunpack.c.l.b16 %v195
    %v283 = vunpack.c.h.b16 %v195
    %v284 = vunpack.c.l.b16 %v196
    %v285 = vunpack.c.h.b16 %v196
    %v286 = vunpack.c.l.b16 %v197
    %v287 = vunpack.c.h.b16 %v197
    %v288 = vunpack.c.l.b16 %v198
    %v289 = vunpack.c.h.b16 %v198
    %v290 = vunpack.c.l.b16 %v199
    %v291 = vunpack.c.h.b16 %v199
    %v292 = vunpack.c.l.b16 %v200
    %v293 = vunpack.c.h.b16 %v200
    %v294 = vunpack.c.l.b16 %v201
    %v295 = vunpack.c.h.b16 %v201
    %v296 = vunpack.c.l.b16 %v202
    %v297 = vunpack.c.h.b16 %v202
    %v298 = vunpack.c.l.b16 %v203
    %v299 = vunpack.c.h.b16 %v203
    %v300 = vunpack.c.l.b16 %v204
    %v301 = vunpack.c.h.b16 %v204
    %v302 = vunpack.c.l.b16 %v205
    %v303 = vunpack.c.h.b16 %v205
    %v304 = vunpack.c.l.b16 %v206
    %v305 = vunpack.c.h.b16 %v206
    %v306 = vunpack.c.l.b16 %v207
    %v307 = vunpack.c.h.b16 %v207
    %v308 = vunpack.c.l.b16 %v208
    %v309 = vunpack.c.h.b16 %v208
    %v310 = vunpack.c.l.b16 %v209
    %v311 = vunpack.c.h.b16 %v209
    %v312 = vunpack.c.l.b16 %v210
    %v313 = vunpack.c.h.b16 %v210
    %v314 = vunpack.c.l.b16 %v211
    %v315 = vunpack.c.h.b16 %v211
    %v316 = vunpack.c.l.b16 %v212
    %v317 = vunpack.c.h.b16 %v212
    %v318 = vunpack.c.l.b16 %v213
    %v319 = vunpack.c.h.b16 %v213
    %v320 = vunpack.c.l.b16 %v214
    %v321 = vunpack.c.h.b16 %v214
    %v322 = vunpack.c.l.b16 %v215
    %v323 = vunpack.c.h.b16 %v215
    %v324 = vunpack.c.l.b16 %v216
    %v325 = vunpack.c.h.b16 %v216
    %v326 = vunpack.c.l.b16 %v217
    %v327 = vunpack.c.h.b16 %v217
    %v328 = vunpack.c.l.b16 %v218
    %v329 = vunpack.c.h.b16 %v218
    %v330 = vunpack.c.l.b16 %v219
    %v331 = vunpack.c.h.b16 %v219
    %v332 = vunpack.c.l.b16 %v220
    %v333 = vunpack.c.h.b16 %v220
    %v334 = vunpack.c.l.b16 %v221
    %v335 = vunpack.c.h.b16 %v221
    %v336 = vunpack.c.l.b16 %v222
    %v337 = vunpack.c.h.b16 %v222
    %v338 = vunpack.c.l.b16 %v223
    %v339 = vunpack.c.h.b16 %v223
    %v340 = vunpack.c.l.b16 %v224
    %v341 = vunpack.c.h.b16 %v224
    %v342 = vunpack.c.l.b16 %v225
    %v343 = vunpack.c.h.b16 %v225
    %v344 = vpack.c.b16 %v284, %v280
    %v345 = vpack.c.b16 %v285, %v281
    %v346 = vpack.c.b16 %v286, %v282
    %v347 = vpack.c.b16 %v287, %v283
    %v348 = vpack.c.b16 %v292, %v288
    %v349 = vpack.c.b16 %v293, %v289
    %v350 = vpack.c.b16 %v294, %v290
    %v351 = vpack.c.b16 %v295, %v291
    %v352 = vpack.c.b16 %v300, %v296
    %v353 = vpack.c.b16 %v301, %v297
    %v354 = vpack.c.b16 %v302, %v298
    %v355 = vpack.c.b16 %v303, %v299
    %v356 = vpack.c.b16 %v308, %v304
    %v357 = vpack.c.b16 %v309, %v305
    %v358 = vpack.c.b16 %v310, %v306
    %v359 = vpack.c.b16 %v311, %v307
    %v360 = vpack.c.b16 %v316, %v312
    %v361 = vpack.c.b16 %v317, %v313
    %v362 = vpack.c.b16 %v318, %v314
    %v363 = vpack.c.b16 %v319, %v315
    %v364 = vpack.c.b16 %v324, %v320
    %v365 = vpack.c.b16 %v325, %v321
    %v366 = vpack.c.b16 %v326, %v322
    %v367 = vpack.c.b16 %v327, %v323
    %v368 = vpack.c.b16 %v332, %v328
    %v369 = vpack.c.b16 %v333, %v329
    %v370 = vpack.c.b16 %v334, %v330
    %v371 = vpack.c.b16 %v335, %v331
    %v372 = vpack.c.b16 %v340, %v336
    %v373 = vpack.c.b16 %v341, %v337
    %v374 = vpack.c.b16 %v342, %v338
    %v375 = vpack.c.b16 %v343, %v339
    %408 = vmatprep.subr.bf16.mxu0 %v373
    %409 = vmatpush1.bf16.msra.mxu0 %v372
    %410 = vmatprep.subr.bf16.mxu0 %v369
    %411 = vmatpush1.bf16.msra.mxu0 %v368
    %412 = vmatprep.subr.bf16.mxu0 %v365
    %413 = vmatpush1.bf16.msra.mxu0 %v364
    %414 = vmatprep.subr.bf16.mxu0 %v361
    %415 = vmatpush1.bf16.msra.mxu0 %v360
    %416 = vmatprep.subr.bf16.mxu0 %v357
    %417 = vmatpush1.bf16.msra.mxu0 %v356
    %418 = vmatprep.subr.bf16.mxu0 %v353
    %419 = vmatpush1.bf16.msra.mxu0 %v352
    %420 = vmatprep.subr.bf16.mxu0 %v349
    %421 = vmatpush1.bf16.msra.mxu0 %v348
    %422 = vmatprep.subr.bf16.mxu0 %v345
    %423 = vmatpush1.bf16.msra.mxu0 %v344
    %424 = vmatprep.subr.bf16.mxu0 0
    %425 = vmatpush2.bf16.msra.mxu0 0
    %426 = vmatprep.subr.bf16.mxu0 0
    %427 = vmatpush2.bf16.msra.mxu0 0
    %428 = vmatprep.subr.bf16.mxu0 0
    %429 = vmatpush2.bf16.msra.mxu0 0
    %430 = vmatprep.subr.bf16.mxu0 0
    %431 = vmatpush2.bf16.msra.mxu0 0
    %432 = vmatprep.subr.bf16.mxu0 0
    %433 = vmatpush2.bf16.msra.mxu0 0
    %434 = vmatprep.subr.bf16.mxu0 0
    %435 = vmatpush2.bf16.msra.mxu0 0
    %436 = vmatprep.subr.bf16.mxu0 0
    %437 = vmatpush2.bf16.msra.mxu0 0
    %438 = vmatprep.subr.bf16.mxu0 0
    %439 = vmatpush2.bf16.msra.mxu0 0
    %440 = vmatprep.mubr.bf16.mxu0 0
    %441 = vmatmul.mubr.bf16.gmra.mxu0 %v193
    %v442 = vpop.f32.mrf.mxu0
    %v443 = vadd.f32 %v231, %v442
    %v444 = vpop.f32.mrf.mxu0
    %v445 = vadd.f32 %v235, %v444
    %v446 = vpop.f32.mrf.mxu0
    %v447 = vpop.f32.mrf.mxu0
    %448 = vdwg.mxu0
    %449 = vmatprep.subr.bf16.mxu0 %v375
    %450 = vmatpush1.bf16.msra.mxu0 %v374
    %451 = vmatprep.subr.bf16.mxu0 %v371
    %452 = vmatpush1.bf16.msra.mxu0 %v370
    %453 = vmatprep.subr.bf16.mxu0 %v367
    %454 = vmatpush1.bf16.msra.mxu0 %v366
    %455 = vmatprep.subr.bf16.mxu0 %v363
    %456 = vmatpush1.bf16.msra.mxu0 %v362
    %457 = vmatprep.subr.bf16.mxu0 %v359
    %458 = vmatpush1.bf16.msra.mxu0 %v358
    %459 = vmatprep.subr.bf16.mxu0 %v355
    %460 = vmatpush1.bf16.msra.mxu0 %v354
    %461 = vmatprep.subr.bf16.mxu0 %v351
    %462 = vmatpush1.bf16.msra.mxu0 %v350
    %463 = vmatprep.subr.bf16.mxu0 %v347
    %464 = vmatpush1.bf16.msra.mxu0 %v346
    %465 = vmatprep.subr.bf16.mxu0 0
    %466 = vmatpush2.bf16.msra.mxu0 0
    %467 = vmatprep.subr.bf16.mxu0 0
    %468 = vmatpush2.bf16.msra.mxu0 0
    %469 = vmatprep.subr.bf16.mxu0 0
    %470 = vmatpush2.bf16.msra.mxu0 0
    %471 = vmatprep.subr.bf16.mxu0 0
    %472 = vmatpush2.bf16.msra.mxu0 0
    %473 = vmatprep.subr.bf16.mxu0 0
    %474 = vmatpush2.bf16.msra.mxu0 0
    %475 = vmatprep.subr.bf16.mxu0 0
    %476 = vmatpush2.bf16.msra.mxu0 0
    %477 = vmatprep.subr.bf16.mxu0 0
    %478 = vmatpush2.bf16.msra.mxu0 0
    %479 = vmatprep.subr.bf16.mxu0 0
    %480 = vmatpush2.bf16.msra.mxu0 0
    %481 = vmatprep.mubr.bf16.mxu0 0
    %482 = vmatmul.mubr.bf16.gmra.mxu0 %v193
    %v483 = vpop.f32.mrf.mxu0
    %v484 = vadd.f32 %v239, %v483
    %v485 = vpop.f32.mrf.mxu0
    %v486 = vadd.f32 %v243, %v485
    %v487 = vpop.f32.mrf.mxu0
    %v488 = vpop.f32.mrf.mxu0
    %489 = vdwg.mxu0
    %v490 = vxor.u32 %v443, 2147483648
    %v491 = vmul.f32 %v490, 1.442695
    %v492 = vpow.pop %v491
    %v493 = vadd.f32 %v492, 1.0
    %v494 = vrcp.pop %v493
    %v495 = vmul.f32 1.0, %v494
    %v496 = vxor.u32 %v445, 2147483648
    %v497 = vmul.f32 %v496, 1.442695
    %v498 = vpow.pop %v497
    %v499 = vadd.f32 %v498, 1.0
    %v500 = vrcp.pop %v499
    %v501 = vmul.f32 1.0, %v500
    %v502 = vmul.f32 %v495, %v486
    %v503 = vadd.f32 %v484, %v502
    %v504 = vtanh.pop %v503
    %v505 = vsub.f32 1.0, %v501
    %v506 = vmul.f32 %v505, %v504
    %v507 = vmul.f32 %v501, %v77
    %v508 = vadd.f32 %v506, %v507
    %v509 = vpack.c.bf16 %v508, %v508
    %v510 = vld [vmem:[#allocation7 + $0x14] sm:$0xf]
    %v511 = vld [vmem:[#allocation7 + $0x2c] sm:$0xf]
    %v512 = vld [vmem:[#allocation7 + $0x44] sm:$0xf]
    %v513 = vld [vmem:[#allocation7 + $0x5c] sm:$0xf]
    %v514 = vld [vmem:[#allocation7 + $0x74] sm:$0xf]
    %v515 = vld [vmem:[#allocation7 + $0x8c] sm:$0xf]
    %v516 = vld [vmem:[#allocation7 + $0xa4] sm:$0xf]
    %v517 = vld [vmem:[#allocation7 + $0xbc] sm:$0xf]
    %v518 = vld [vmem:[#allocation7 + $0xd4] sm:$0xf]
    %v519 = vld [vmem:[#allocation7 + $0xec] sm:$0xf]
    %v520 = vld [vmem:[#allocation7 + $0x104] sm:$0xf]
    %v521 = vld [vmem:[#allocation7 + $0x11c] sm:$0xf]
    %v522 = vld [vmem:[#allocation7 + $0x134] sm:$0xf]
    %v523 = vld [vmem:[#allocation7 + $0x14c] sm:$0xf]
    %v524 = vld [vmem:[#allocation7 + $0x164] sm:$0xf]
    %v525 = vld [vmem:[#allocation7 + $0x17c] sm:$0xf]
    %v526 = vld [vmem:[#allocation8 + $0x5] sm:$0x1]
    %v528 = vlaneseq
    %v529 = vshrl.u32 %v528, 7
    %v530 = vsub.s32 0, %v529
    %v531 = vrot.slane %v526, %v530
    %v549 = vunpack.c.l.b16 %v510
    %v550 = vunpack.c.l.b16 %v511
    %v551 = vunpack.c.l.b16 %v512
    %v552 = vunpack.c.l.b16 %v513
    %v553 = vunpack.c.l.b16 %v514
    %v554 = vunpack.c.l.b16 %v515
    %v555 = vunpack.c.l.b16 %v516
    %v556 = vunpack.c.l.b16 %v517
    %v557 = vunpack.c.l.b16 %v518
    %v558 = vunpack.c.l.b16 %v519
    %v559 = vunpack.c.l.b16 %v520
    %v560 = vunpack.c.l.b16 %v521
    %v561 = vunpack.c.l.b16 %v522
    %v562 = vunpack.c.l.b16 %v523
    %v563 = vunpack.c.l.b16 %v524
    %v564 = vunpack.c.l.b16 %v525
    %v565 = vpack.c.b16 %v550, %v549
    %v566 = vpack.c.b16 %v552, %v551
    %v567 = vpack.c.b16 %v554, %v553
    %v568 = vpack.c.b16 %v556, %v555
    %v569 = vpack.c.b16 %v558, %v557
    %v570 = vpack.c.b16 %v560, %v559
    %v571 = vpack.c.b16 %v562, %v561
    %v572 = vpack.c.b16 %v564, %v563
    %581 = vmatprep.subr.bf16.mxu0 0
    %582 = vmatpush1.bf16.msra.mxu0 %v572
    %583 = vmatprep.subr.bf16.mxu0 0
    %584 = vmatpush1.bf16.msra.mxu0 %v571
    %585 = vmatprep.subr.bf16.mxu0 0
    %586 = vmatpush1.bf16.msra.mxu0 %v570
    %587 = vmatprep.subr.bf16.mxu0 0
    %588 = vmatpush1.bf16.msra.mxu0 %v569
    %589 = vmatprep.subr.bf16.mxu0 0
    %590 = vmatpush1.bf16.msra.mxu0 %v568
    %591 = vmatprep.subr.bf16.mxu0 0
    %592 = vmatpush1.bf16.msra.mxu0 %v567
    %593 = vmatprep.subr.bf16.mxu0 0
    %594 = vmatpush1.bf16.msra.mxu0 %v566
    %595 = vmatprep.subr.bf16.mxu0 0
    %596 = vmatpush1.bf16.msra.mxu0 %v565
    %597 = vmatprep.subr.bf16.mxu0 0
    %598 = vmatpush2.bf16.msra.mxu0 0
    %599 = vmatprep.subr.bf16.mxu0 0
    %600 = vmatpush2.bf16.msra.mxu0 0
    %601 = vmatprep.subr.bf16.mxu0 0
    %602 = vmatpush2.bf16.msra.mxu0 0
    %603 = vmatprep.subr.bf16.mxu0 0
    %604 = vmatpush2.bf16.msra.mxu0 0
    %605 = vmatprep.subr.bf16.mxu0 0
    %606 = vmatpush2.bf16.msra.mxu0 0
    %607 = vmatprep.subr.bf16.mxu0 0
    %608 = vmatpush2.bf16.msra.mxu0 0
    %609 = vmatprep.subr.bf16.mxu0 0
    %610 = vmatpush2.bf16.msra.mxu0 0
    %611 = vmatprep.subr.bf16.mxu0 0
    %612 = vmatpush2.bf16.msra.mxu0 0
    %613 = vmatprep.mubr.bf16.mxu0 0
    %614 = vmatmul.mubr.bf16.gmra.mxu0 %v509
    %v615 = vpop.f32.mrf.mxu0
    %v616 = vadd.f32 %v531, %v615
    %v617 = vpop.f32.mrf.mxu0
    %v618 = vpop.f32.mrf.mxu0
    %v619 = vpop.f32.mrf.mxu0
    %620 = vdwg.mxu0
    %621 = vst [vmem:[#allocation10] sm:$0xff] %v616
    %622 = vst [vmem:[#allocation11] sm:$0xff] %v508
    // Predicated region
    $region38: #{tpu_custom_call.1} parent=1 // pred_check
      _
    $region39: #{tpu_custom_call.1} parent=1 // pred_check_branch
      %624 = sbr.rel (0) target = $region41
    $region40: #{tpu_custom_call.1} parent=1 // pred_region
      %s626 = ssub.s32 128, 128
      %627 = vsyncadd [#allocation4], %s626
      %s629 = sshll.u32 [#allocation10], 4
      %s630 = int_to_ptr.vmem [resolvable:$true] %s629
      %632 = dma.vmem_to_hbm [thread:$0]  %s630, 128, %s4, [#allocation4]
    $region41: #{tpu_custom_call.1} parent=1 // pred_fallthru
      _
    // Predicated region
    $region42: #{tpu_custom_call.1} parent=1 // pred_check
      _
    $region43: #{tpu_custom_call.1} parent=1 // pred_check_branch
      %634 = sbr.rel (0) target = $region45
    $region44: #{tpu_custom_call.1} parent=1 // pred_region
      %s636 = ssub.s32 128, 128
      %637 = vsyncadd [#allocation12], %s636
      %s639 = sshll.u32 [#allocation11], 4
      %s640 = int_to_ptr.vmem [resolvable:$true] %s639
      %642 = dma.vmem_to_hbm [thread:$0]  %s640, 128, %s5, [#allocation12]
    $region45: #{tpu_custom_call.1} parent=1 // pred_fallthru
      _
    // Predicated region
    $region46: #{tpu_custom_call.1} parent=1 // pred_check
      _
    $region47: #{tpu_custom_call.1} parent=1 // pred_check_branch
      %644 = sbr.rel (0) target = $region49
    $region48: #{tpu_custom_call.1} parent=1 // pred_region
      %645 = dma.done [#allocation4], 128
    $region49: #{tpu_custom_call.1} parent=1 // pred_fallthru
      _
    // Predicated region
    $region50: #{tpu_custom_call.1} parent=1 // pred_check
      _
    $region51: #{tpu_custom_call.1} parent=1 // pred_check_branch
      %647 = sbr.rel (0) target = $region53
    $region52: #{tpu_custom_call.1} parent=1 // pred_region
      %648 = dma.done [#allocation12], 128
    $region53: #{tpu_custom_call.1} parent=1 // pred_fallthru
      _
    %649 = vsyncpa [#allocation3], 1
    %650 = vsyncpa [#allocation6], 1
    %651 = vsyncpa [#allocation9], 1
    %652 = vsyncpa [#allocation4], 1
    %653 = vsyncpa [#allocation12], 1

</llo_original>
